<compile_context>
chip_gen: v6e
topology: v6e:2x2x1
jax: 0.10.0
libtpu: 0.0.40
codegen_flags: <defaults>
</compile_context>

<pallas_src>
import functools

import jax
import jax.numpy as jnp
from jax.experimental import pallas as pl
from jax.experimental.pallas import tpu as pltpu

STATE_SPACE = 2      # env.observation_space.shape[0] for MountainCar-v0
HIDDEN = 20
ACTION_SPACE = 3     # env.action_space.n for MountainCar-v0

LANE = 128
DEFAULT_TILE_B = 512  # batch rows per grid step (multiple of 128)


def _round_up(n, m):
    return ((n + m - 1) // m) * m


def policy_kernel(xT_ref, w1_ref, b1_ref, w3_ref, b3_ref, outT_ref):
    """One batch tile in transposed (lane-dense) layout.

    xT_ref   : (S, TB)  - batch on the lane axis
    w1_ref   : (H, S)   - PyTorch nn.Linear orientation
    b1_ref   : (H, 1)
    w3_ref   : (A, H)
    b3_ref   : (A, 1)
    outT_ref : (A, TB)
    """
    xT = xT_ref[...]                                    # (S, TB)
    w1 = w1_ref[...]                                    # (H, S)

    # fc1: K = 2 contraction -> 2-term VPU outer-product (skip the MXU; a K=2
    # matmul would be padded to full contraction depth for no useful MACs).
    hT = w1[:, 0:1] * xT[0:1, :]                        # (H, TB)
    for s in range(1, STATE_SPACE):                     # unrolled at trace time (S=2)
        hT = hT + w1[:, s:s + 1] * xT[s:s + 1, :]
    hT = jnp.maximum(hT + b1_ref[...], 0.0)             # ReLU

    # fc3: K = 20 contraction on the MXU; result stays lane-dense (A, TB).
    logitsT = jnp.dot(w3_ref[...], hT,
                      preferred_element_type=jnp.float32) + b3_ref[...]

    # softmax over the action axis (axis=0 here == dim=1 in batch-major layout).
    m = jnp.max(logitsT, axis=0, keepdims=True)
    e = jnp.exp(logitsT - m)
    denom = jnp.sum(e, axis=0, keepdims=True)
    # Reciprocal goes to the EUP slot instead of a VPU divide.
    outT_ref[...] = (e * pl.reciprocal(denom, approx=False)).astype(outT_ref.dtype)


@functools.partial(jax.jit, static_argnames=("tile_b",))
def policy_forward(x, w1, b1, w3, b3, *, tile_b=DEFAULT_TILE_B):
    """softmax(relu(x @ w1.T + b1) @ w3.T + b3, dim=1) — same semantics as Policy.forward.

    x : (B, STATE_SPACE) f32; weights in PyTorch nn.Linear orientation:
    w1 (HIDDEN, STATE_SPACE), b1 (HIDDEN,), w3 (ACTION_SPACE, HIDDEN), b3 (ACTION_SPACE,).
    Returns (B, ACTION_SPACE) f32.
    """
    B, S = x.shape
    assert S == STATE_SPACE
    H, A = HIDDEN, ACTION_SPACE

    # Lane-dense plumbing: batch on the last axis, padded to a multiple of the tile.
    tile_b = max(LANE, _round_up(tile_b, LANE))
    Bp = _round_up(max(B, 1), LANE)          # pad batch to lane multiple
    tb = min(tile_b, Bp)                     # tile never exceeds padded batch
    Bp = _round_up(Bp, tb)                   # padded batch is a multiple of the tile

    xT = jnp.pad(x.T, ((0, 0), (0, Bp - B)))             # (S, Bp)
    b1c = b1.reshape(H, 1)
    b3c = b3.reshape(A, 1)

    outT = pl.pallas_call(
        policy_kernel,
        out_shape=jax.ShapeDtypeStruct((A, Bp), jnp.float32),
        grid_spec=pltpu.PrefetchScalarGridSpec(
            num_scalar_prefetch=0,
            grid=(Bp // tb,),
            in_specs=[
                pl.BlockSpec((S, tb), lambda i: (0, i)),   # xT: tiled over batch lanes
                pl.BlockSpec((H, S), lambda i: (0, 0)),    # w1: resident every step
                pl.BlockSpec((H, 1), lambda i: (0, 0)),    # b1
                pl.BlockSpec((A, H), lambda i: (0, 0)),    # w3
                pl.BlockSpec((A, 1), lambda i: (0, 0)),    # b3
            ],
            out_specs=pl.BlockSpec((A, tb), lambda i: (0, i)),
        ),
        compiler_params=pltpu.CompilerParams(
            dimension_semantics=("parallel",),             # shard batch tiles across TCs (v7x)
        ),
    )(xT, w1, b1c, w3, b3c)

    # TODO(synk): the RL loop's Categorical sampling / log-prob could be fused into
    # this kernel to avoid a second HBM round trip; the module's forward() only
    # returns action probabilities, so it is kept out here.
    return outT[:, :B].T                                   # back to (B, A)


if __name__ == "__main__":
    key = jax.random.PRNGKey(0)
    kx, k1, k2, k3, k4 = jax.random.split(key, 5)

    batch = 4
    x = jax.random.normal(kx, (batch, STATE_SPACE), dtype=jnp.float32)

    # PyTorch-Linear-style uniform init, weights kept in PyTorch (out, in) orientation.
    lim1 = 1.0 / float(STATE_SPACE) ** 0.5
    lim3 = 1.0 / float(HIDDEN) ** 0.5
    w1 = jax.random.uniform(k1, (HIDDEN, STATE_SPACE), jnp.float32, -lim1, lim1)
    b1 = jax.random.uniform(k2, (HIDDEN,), jnp.float32, -lim1, lim1)
    w3 = jax.random.uniform(k3, (ACTION_SPACE, HIDDEN), jnp.float32, -lim3, lim3)
    b3 = jax.random.uniform(k4, (ACTION_SPACE,), jnp.float32, -lim3, lim3)

    probs = policy_forward(x, w1, b1, w3, b3)
    jax.block_until_ready(probs)

    # Pure-JAX reference (batch-major, identical to the PyTorch module).
    h_ref = jnp.maximum(x @ w1.T + b1, 0.0)
    ref = jax.nn.softmax(h_ref @ w3.T + b3, axis=1)

    assert probs.shape == (batch, ACTION_SPACE)
    assert jnp.allclose(probs, ref, atol=1e-5), "mismatch vs reference"
    assert jnp.allclose(jnp.sum(probs, axis=1), 1.0, atol=1e-5)

    print("KERNEL_OK")
</pallas_src>

<mosaic_0001>
module attributes {stable_mosaic.version = 11 : i64} {
  func.func @policy_kernel(%arg0: i32, %arg1: memref<2x128xf32, #tpu.memory_space<vmem>>, %arg2: memref<20x2xf32, #tpu.memory_space<vmem>>, %arg3: memref<20x1xf32, #tpu.memory_space<vmem>>, %arg4: memref<3x20xf32, #tpu.memory_space<vmem>>, %arg5: memref<3x1xf32, #tpu.memory_space<vmem>>, %arg6: memref<3x128xf32, #tpu.memory_space<vmem>>) attributes {dimension_semantics = [#tpu.dimension_semantics<parallel>], iteration_bounds = array<i64: 1>, scalar_prefetch = 0 : i64, scratch_operands = 0 : i64, tpu.core_type = #tpu.core_type<tc>, window_params = [{transform_indices = @transform_0, window_bounds = array<i64: 2, 128>}, {pipeline_mode = #tpu.pipeline_mode<synchronous>, transform_indices = @transform_1, window_bounds = array<i64: 20, 2>}, {pipeline_mode = #tpu.pipeline_mode<synchronous>, transform_indices = @transform_2, window_bounds = array<i64: 20, 1>}, {pipeline_mode = #tpu.pipeline_mode<synchronous>, transform_indices = @transform_3, window_bounds = array<i64: 3, 20>}, {pipeline_mode = #tpu.pipeline_mode<synchronous>, transform_indices = @transform_4, window_bounds = array<i64: 3, 1>}, {transform_indices = @transform_5, window_bounds = array<i64: 3, 128>}]} {
    %c0 = arith.constant 0 : index
    %c0_0 = arith.constant 0 : index
    %0 = vector.load %arg1[%c0, %c0_0] : memref<2x128xf32, #tpu.memory_space<vmem>>, vector<2x128xf32>
    %c0_1 = arith.constant 0 : index
    %c0_2 = arith.constant 0 : index
    %1 = vector.load %arg2[%c0_1, %c0_2] : memref<20x2xf32, #tpu.memory_space<vmem>>, vector<20x2xf32>
    %2 = vector.extract_strided_slice %1 {offsets = [0, 0], sizes = [20, 1], strides = [1, 1]} : vector<20x2xf32> to vector<20x1xf32>
    %3 = vector.extract_strided_slice %0 {offsets = [0, 0], sizes = [1, 128], strides = [1, 1]} : vector<2x128xf32> to vector<1x128xf32>
    %4 = vector.broadcast %2 : vector<20x1xf32> to vector<20x128xf32>
    %5 = vector.broadcast %3 : vector<1x128xf32> to vector<20x128xf32>
    %6 = arith.mulf %4, %5 : vector<20x128xf32>
    %7 = vector.extract_strided_slice %1 {offsets = [0, 1], sizes = [20, 1], strides = [1, 1]} : vector<20x2xf32> to vector<20x1xf32>
    %8 = vector.extract_strided_slice %0 {offsets = [1, 0], sizes = [1, 128], strides = [1, 1]} : vector<2x128xf32> to vector<1x128xf32>
    %9 = vector.broadcast %7 : vector<20x1xf32> to vector<20x128xf32>
    %10 = vector.broadcast %8 : vector<1x128xf32> to vector<20x128xf32>
    %11 = arith.mulf %9, %10 : vector<20x128xf32>
    %12 = arith.addf %6, %11 : vector<20x128xf32>
    %c0_3 = arith.constant 0 : index
    %c0_4 = arith.constant 0 : index
    %13 = vector.load %arg3[%c0_3, %c0_4] : memref<20x1xf32, #tpu.memory_space<vmem>>, vector<20x1xf32>
    %14 = vector.broadcast %13 : vector<20x1xf32> to vector<20x128xf32>
    %15 = arith.addf %12, %14 : vector<20x128xf32>
    %cst = arith.constant 0.000000e+00 : f32
    %16 = vector.broadcast %cst : f32 to vector<20x128xf32>
    %17 = arith.maximumf %15, %16 : vector<20x128xf32>
    %c0_5 = arith.constant 0 : index
    %c0_6 = arith.constant 0 : index
    %18 = vector.load %arg4[%c0_5, %c0_6] : memref<3x20xf32, #tpu.memory_space<vmem>>, vector<3x20xf32>
    %cst_7 = arith.constant dense<0.000000e+00> : vector<3x128xf32>
    %19 = tpu.matmul %18, %17, %cst_7 {dimension_numbers = #tpu.dot_dimension_numbers<[1], [0], [0], [1], [0, 0, 1, 1], [], []>} : vector<3x20xf32>, vector<20x128xf32>, vector<3x128xf32> -> vector<3x128xf32>
    %c0_8 = arith.constant 0 : index
    %c0_9 = arith.constant 0 : index
    %20 = vector.load %arg5[%c0_8, %c0_9] : memref<3x1xf32, #tpu.memory_space<vmem>>, vector<3x1xf32>
    %21 = vector.broadcast %20 : vector<3x1xf32> to vector<3x128xf32>
    %22 = arith.addf %19, %21 : vector<3x128xf32>
    %cst_10 = arith.constant dense<0xFF800000> : vector<128xf32>
    %23 = vector.multi_reduction <maximumf>, %22, %cst_10 [0] : vector<3x128xf32> to vector<128xf32>
    %24 = vector.shape_cast %23 : vector<128xf32> to vector<1x128xf32>
    %25 = vector.broadcast %24 : vector<1x128xf32> to vector<3x128xf32>
    %26 = arith.subf %22, %25 : vector<3x128xf32>
    %27 = math.exp %26 : vector<3x128xf32>
    %cst_11 = arith.constant dense<0.000000e+00> : vector<128xf32>
    %28 = vector.multi_reduction <add>, %27, %cst_11 [0] : vector<3x128xf32> to vector<128xf32>
    %29 = vector.shape_cast %28 : vector<128xf32> to vector<1x128xf32>
    %30 = tpu.reciprocal %29 : vector<1x128xf32> -> vector<1x128xf32>
    %31 = vector.broadcast %30 : vector<1x128xf32> to vector<3x128xf32>
    %32 = arith.mulf %27, %31 : vector<3x128xf32>
    %c0_12 = arith.constant 0 : index
    %c0_13 = arith.constant 0 : index
    %33 = vector.load %arg6[%c0_12, %c0_13] : memref<3x128xf32, #tpu.memory_space<vmem>>, vector<3x128xf32>
    tpu.vector_store %arg6[%c0_12, %c0_13], %32 {strides = array<i32>} : memref<3x128xf32, #tpu.memory_space<vmem>>, vector<3x128xf32>,
    return
  }
  func.func @transform_0(%arg0: i32) -> (i32, i32) {
    %c0_i32 = arith.constant 0 : i32
    %c0_i32_0 = arith.constant 0 : i32
    return %c0_i32, %arg0 : i32, i32
  }
  func.func @transform_1(%arg0: i32) -> (i32, i32) {
    %c0_i32 = arith.constant 0 : i32
    %c0_i32_0 = arith.constant 0 : i32
    %c0_i32_1 = arith.constant 0 : i32
    return %c0_i32, %c0_i32_0 : i32, i32
  }
  func.func @transform_2(%arg0: i32) -> (i32, i32) {
    %c0_i32 = arith.constant 0 : i32
    %c0_i32_0 = arith.constant 0 : i32
    %c0_i32_1 = arith.constant 0 : i32
    return %c0_i32, %c0_i32_0 : i32, i32
  }
  func.func @transform_3(%arg0: i32) -> (i32, i32) {
    %c0_i32 = arith.constant 0 : i32
    %c0_i32_0 = arith.constant 0 : i32
    %c0_i32_1 = arith.constant 0 : i32
    return %c0_i32, %c0_i32_0 : i32, i32
  }
  func.func @transform_4(%arg0: i32) -> (i32, i32) {
    %c0_i32 = arith.constant 0 : i32
    %c0_i32_0 = arith.constant 0 : i32
    %c0_i32_1 = arith.constant 0 : i32
    return %c0_i32, %c0_i32_0 : i32, i32
  }
  func.func @transform_5(%arg0: i32) -> (i32, i32) {
    %c0_i32 = arith.constant 0 : i32
    %c0_i32_0 = arith.constant 0 : i32
    return %c0_i32, %arg0 : i32, i32
  }
}

</mosaic_0001>

<llo_original>
// kernel: policy_forward.1
$region0: #{policy_forward.1}
  #allocation0 [shape = 'u32[]', space=smem, size = 0x4, offset = 0x4, fixed_abs, tag = 'smem constant byte address 0x4 - core index']
  #allocation1 [shape = 'u32[144,128]{1,0:T(1,128)}', space=vmem, size = 0x12000, scoped, tag = 'internal scratch']
  %s0 = inlined_call_operand.vmem [shape: f32[2,128], index: 0, kind: input, shape index: {}]
  %s1 = inlined_call_operand.vmem [shape: f32[20,2], index: 1, kind: input, shape index: {}]
  %s2 = inlined_call_operand.vmem [shape: f32[20,1], index: 2, kind: input, shape index: {}]
  %s3 = inlined_call_operand.vmem [shape: f32[3,20], index: 3, kind: input, shape index: {}]
  %s4 = inlined_call_operand.vmem [shape: f32[3,1], index: 4, kind: input, shape index: {}]
  %s5 = inlined_call_operand.vmem [shape: f32[3,128], index: 5, kind: output, shape index: {}]
  %s6 = sld [smem:[#allocation0]]
  $region30: #{policy_forward.1} parent=0
    _
  %s8 = ssub.s32 1, %s6
  %s9 = scalar_select 0, %s8, %s6
  // Predicated region
  $region2: #{policy_forward.1} parent=0 // pred_check
    _
  $region3: #{policy_forward.1} parent=0 // pred_check_branch
    %11 = sbr.rel (0) target = $region5
  $region4: #{policy_forward.1} parent=0 // pred_region
    _
  $region5: #{policy_forward.1} parent=0 // pred_fallthru
    _
  // Predicated region
  $region6: #{policy_forward.1} parent=0 // pred_check
    _
  $region7: #{policy_forward.1} parent=0 // pred_check_branch
    %13 = sbr.rel (0) target = $region9
  $region8: #{policy_forward.1} parent=0 // pred_region
    _
  $region9: #{policy_forward.1} parent=0 // pred_fallthru
    _
  // Predicated region
  $region10: #{policy_forward.1} parent=0 // pred_check
    _
  $region11: #{policy_forward.1} parent=0 // pred_check_branch
    %15 = sbr.rel (0) target = $region13
  $region12: #{policy_forward.1} parent=0 // pred_region
    _
  $region13: #{policy_forward.1} parent=0 // pred_fallthru
    _
  // Predicated region
  $region14: #{policy_forward.1} parent=0 // pred_check
    _
  $region15: #{policy_forward.1} parent=0 // pred_check_branch
    %17 = sbr.rel (0) target = $region17
  $region16: #{policy_forward.1} parent=0 // pred_region
    _
  $region17: #{policy_forward.1} parent=0 // pred_fallthru
    _
  // Predicated region
  $region18: #{policy_forward.1} parent=0 // pred_check
    _
  $region19: #{policy_forward.1} parent=0 // pred_check_branch
    %19 = sbr.rel (0) target = $region21
  $region20: #{policy_forward.1} parent=0 // pred_region
    _
  $region21: #{policy_forward.1} parent=0 // pred_fallthru
    _
  %v20 = vld [vmem:[%s0] sm:$0x3]
  %v21 = vld [vmem:[%s1] sm:$0xff]
  %v22 = vld [vmem:[%s1 + $0x8] sm:$0xff]
  %v23 = vld [vmem:[%s1 + $0x10] sm:$0xf]
  %25 = vset.pattern.permute.xlu0 0
  %26 = vperm.xlu0 %25, %v21
  %v27 = vpop.permute.xlu0 %26
  %30 = vset.pattern.permute.xlu0 0
  %31 = vperm.xlu0 %30, %v22
  %v32 = vpop.permute.xlu0 %31
  %35 = vset.pattern.permute.xlu0 0
  %36 = vperm.xlu0 %35, %v23
  %v37 = vpop.permute.xlu0 %36
  %v39 = vlaneseq
  %v40 = vshrl.u32 %v39, 7
  %v41 = vsub.s32 0, %v40
  %v42 = vrot.slane %v20, %v41
  %v43 = vmul.f32 %v27, %v42
  %v44 = vmul.f32 %v32, %v42
  %v45 = vmul.f32 %v37, %v42
  %46 = vset.pattern.permute.xlu0 1
  %47 = vperm.xlu0 %46, %v21
  %v48 = vpop.permute.xlu0 %47
  %50 = vset.pattern.permute.xlu0 1
  %51 = vperm.xlu0 %50, %v22
  %v52 = vpop.permute.xlu0 %51
  %54 = vset.pattern.permute.xlu0 1
  %55 = vperm.xlu0 %54, %v23
  %v56 = vpop.permute.xlu0 %55
  %v58 = vlaneseq
  %v59 = vshrl.u32 %v58, 7
  %v60 = vsub.s32 1, %v59
  %v61 = vrot.slane %v20, %v60
  %v62 = vmul.f32 %v48, %v61
  %v63 = vmul.f32 %v52, %v61
  %v64 = vmul.f32 %v56, %v61
  %v65 = vadd.f32 %v43, %v62
  %v66 = vadd.f32 %v44, %v63
  %v67 = vadd.f32 %v45, %v64
  %v68 = vld [vmem:[%s2] sm:$0xff]
  %v69 = vld [vmem:[%s2 + $0x8] sm:$0xff]
  %v70 = vld [vmem:[%s2 + $0x10] sm:$0xf]
  %72 = vset.pattern.permute.xlu0 0
  %73 = vperm.xlu0 %72, %v68
  %v74 = vpop.permute.xlu0 %73
  %77 = vset.pattern.permute.xlu0 0
  %78 = vperm.xlu0 %77, %v69
  %v79 = vpop.permute.xlu0 %78
  %82 = vset.pattern.permute.xlu0 0
  %83 = vperm.xlu0 %82, %v70
  %v84 = vpop.permute.xlu0 %83
  %v86 = vadd.f32 %v65, %v74
  %v87 = vadd.f32 %v66, %v79
  %v88 = vadd.f32 %v67, %v84
  %v89 = vmax.f32 %v86, 0.0
  %v90 = vmax.f32 %v87, 0.0
  %v91 = vmax.f32 %v88, 0.0
  %v92 = vld [vmem:[%s3] sm:$0x7]
  %v93 = vld [vmem:[%s4] sm:$0x7]
  %95 = vset.pattern.permute.xlu0 0
  %96 = vperm.xlu0 %95, %v93
  %v97 = vpop.permute.xlu0 %96
  %vm99 = vcmask 162816
  %v101 = vsel %vm99, %v92, 0
  %vm103 = vcmask 1043456
  %v105 = vsel %vm103, %v91, 0
  %107 = vmatprep.subr.mxu0 0.0
  %108 = vmatpush1.msra.mxu0 0.0
  %109 = vmatprep.subr.mxu0 0.0
  %110 = vmatpush1.msra.mxu0 0.0
  %111 = vmatprep.subr.mxu0 0.0
  %112 = vmatpush1.msra.mxu0 0.0
  %113 = vmatprep.subr.mxu0 0.0
  %114 = vmatpush1.msra.mxu0 0.0
  %115 = vmatprep.subr.mxu0 0.0
  %116 = vmatpush1.msra.mxu0 0.0
  %117 = vmatprep.subr.mxu0 0.0
  %118 = vmatpush1.msra.mxu0 0.0
  %119 = vmatprep.subr.mxu0 0.0
  %120 = vmatpush1.msra.mxu0 0.0
  %121 = vmatprep.subr.mxu0 0.0
  %122 = vmatpush1.msra.mxu0 0.0
  %123 = vmatprep.subr.mxu0 0.0
  %124 = vmatpush1.msra.mxu0 0.0
  %125 = vmatprep.subr.mxu0 0.0
  %126 = vmatpush1.msra.mxu0 0.0
  %127 = vmatprep.subr.mxu0 0.0
  %128 = vmatpush1.msra.mxu0 0.0
  %129 = vmatprep.subr.mxu0 0.0
  %130 = vmatpush1.msra.mxu0 0.0
  %131 = vmatprep.subr.mxu0 0.0
  %132 = vmatpush1.msra.mxu0 0.0
  %133 = vmatprep.subr.mxu0 0.0
  %134 = vmatpush1.msra.mxu0 %v105
  %135 = vmatprep.subr.mxu0 0.0
  %136 = vmatpush1.msra.mxu0 %v90
  %137 = vmatprep.subr.mxu0 0.0
  %138 = vmatpush1.msra.mxu0 %v89
  %139 = vmatprep.subr.mxu0 0.0
  %140 = vmatpush2.msra.mxu0 0.0
  %141 = vmatprep.subr.mxu0 0.0
  %142 = vmatpush2.msra.mxu0 0.0
  %143 = vmatprep.subr.mxu0 0.0
  %144 = vmatpush2.msra.mxu0 0.0
  %145 = vmatprep.subr.mxu0 0.0
  %146 = vmatpush2.msra.mxu0 0.0
  %147 = vmatprep.subr.mxu0 0.0
  %148 = vmatpush2.msra.mxu0 0.0
  %149 = vmatprep.subr.mxu0 0.0
  %150 = vmatpush2.msra.mxu0 0.0
  %151 = vmatprep.subr.mxu0 0.0
  %152 = vmatpush2.msra.mxu0 0.0
  %153 = vmatprep.subr.mxu0 0.0
  %154 = vmatpush2.msra.mxu0 0.0
  %155 = vmatprep.subr.mxu0 0.0
  %156 = vmatpush2.msra.mxu0 0.0
  %157 = vmatprep.subr.mxu0 0.0
  %158 = vmatpush2.msra.mxu0 0.0
  %159 = vmatprep.subr.mxu0 0.0
  %160 = vmatpush2.msra.mxu0 0.0
  %161 = vmatprep.subr.mxu0 0.0
  %162 = vmatpush2.msra.mxu0 0.0
  %163 = vmatprep.subr.mxu0 0.0
  %164 = vmatpush2.msra.mxu0 0.0
  %165 = vmatprep.subr.mxu0 0.0
  %166 = vmatpush2.msra.mxu0 0.0
  %167 = vmatprep.subr.mxu0 0.0
  %168 = vmatpush2.msra.mxu0 0.0
  %169 = vmatprep.subr.mxu0 0.0
  %170 = vmatpush2.msra.mxu0 0.0
  %171 = vmatprep.mubr.f32.mxu0 0.0
  %172 = vmatmul.mubr.f32.gmra.mxu0 %v101
  %v173 = vpop.f32.mrf.mxu0
  %v174 = vadd.f32 %v97, %v173
  %v175 = vpop.f32.mrf.mxu0
  %176 = vdwg.mxu0
  %vm177 = vcmask 1042432
  %v178 = vsel %vm177, %v174, -inf
  %v179 = vrot.slane %v178, 4
  %v180 = vmax.f32 %v178, %v179
  %v181 = vrot.slane %v180, 2
  %v182 = vmax.f32 %v180, %v181
  %v183 = vrot.slane %v182, 1
  %v184 = vmax.f32 %v182, %v183
  %v185 = vsub.f32 %v174, %v184
  %v186 = vmul.f32 %v185, 1.442695
  %v187 = vpow.pop %v186
  %v188 = vsel %vm177, %v187, 0.0
  %v189 = vrot.slane %v188, 4
  %v190 = vadd.f32 %v188, %v189
  %v191 = vrot.slane %v190, 2
  %v192 = vadd.f32 %v190, %v191
  %v193 = vrot.slane %v192, 1
  %v194 = vadd.f32 %v192, %v193
  %v195 = vrcp.pop %v194
  %v196 = vmul.f32 %v187, %v195
  %197 = vst [vmem:[%s5] sm:$0x7] %v196
  // Predicated region
  $region22: #{policy_forward.1} parent=0 // pred_check
    _
  $region23: #{policy_forward.1} parent=0 // pred_check_branch
    %199 = sbr.rel (0) target = $region25
  $region24: #{policy_forward.1} parent=0 // pred_region
    _
  $region25: #{policy_forward.1} parent=0 // pred_fallthru
    _
  // Predicated region
  $region26: #{policy_forward.1} parent=0 // pred_check
    _
  $region27: #{policy_forward.1} parent=0 // pred_check_branch
    %201 = sbr.rel (0) target = $region29
  $region28: #{policy_forward.1} parent=0 // pred_region
    _
  $region29: #{policy_forward.1} parent=0 // pred_fallthru
    _

</llo_original>
